<compile_context>
chip_gen: v7x
topology: tpu7x:2x2x1
jax: 0.10.0
libtpu: 0.0.40
codegen_flags: <defaults>
</compile_context>

<pallas_src>
import math
import functools

import jax
import jax.numpy as jnp
from jax.experimental import pallas as pl
from jax.experimental.pallas import tpu as pltpu

_SUBLANES = 8
_MIN_LANES = 128
# Candidate lane widths (multiples of 128). Widest copy-free view wins:
# wider lanes -> wide unmasked vector stores and larger contiguous DMAs.
_LANE_CANDIDATES = (4096, 2048, 1024, 512, 256, 128)
# ~2 MiB blocks for f32 (512K elems): 2 bufs x (in+out) = ~8 MiB VMEM,
# comfortably within every generation's scoped-VMEM default.
_TARGET_BLOCK_ELEMS = 512 * 1024


def _activate_kernel(x_ref, o_ref, *, activate_fun):
    x = x_ref[...]
    if activate_fun == "relu":
        o_ref[...] = jnp.maximum(x, jnp.zeros_like(x))
    elif activate_fun == "gelu":
        # exact (erf-based) gelu, matching torch: x * 0.5 * (1 + erf(x/sqrt(2)))
        xf = x.astype(jnp.float32)
        y = xf * 0.5 * (1.0 + jax.lax.erf(xf * (1.0 / math.sqrt(2.0))))
        o_ref[...] = y.astype(o_ref.dtype)
    else:
        raise ValueError(f"unsupported activate_fun: {activate_fun}")


def _choose_layout(n):
    """Pick (lanes, padded_n): widest lane width with zero padding if possible."""
    for lanes in _LANE_CANDIDATES:
        if n % (_SUBLANES * lanes) == 0:
            return lanes, n  # copy-free path
    # Misaligned size: fall back to 128 lanes, pad to the small 8*128 quantum.
    quantum = _SUBLANES * _MIN_LANES
    padded_n = ((n + quantum - 1) // quantum) * quantum
    return _MIN_LANES, padded_n


def activate_fun(x, activate_fun="gelu"):
    """Pallas equivalent of ActivateFun.forward. Works for any input shape."""
    orig_shape = x.shape
    orig_dtype = x.dtype

    flat = x.reshape(-1)
    n = flat.shape[0]
    if n == 0:
        return x

    lanes, padded_n = _choose_layout(n)
    if padded_n != n:
        # Only for sizes not a multiple of 1024 elements; XLA cannot fuse this
        # pad/slice pair into the pallas_call, so the aligned path avoids it.
        flat = jnp.pad(flat, (0, padded_n - n))

    rows = padded_n // lanes  # always a multiple of 8

    # Block rows: target ~_TARGET_BLOCK_ELEMS per block, multiple of 8,
    # clamped to the actual row count for small inputs.
    block_rows = max(
        _SUBLANES, (_TARGET_BLOCK_ELEMS // lanes) // _SUBLANES * _SUBLANES
    )
    block_rows = min(block_rows, rows)
    grid = (pl.cdiv(rows, block_rows),)  # last block may be partial (masked)

    x2d = flat.reshape(rows, lanes)
    kernel = functools.partial(_activate_kernel, activate_fun=activate_fun)

    out2d = pl.pallas_call(
        kernel,
        out_shape=jax.ShapeDtypeStruct((rows, lanes), orig_dtype),
        grid_spec=pltpu.PrefetchScalarGridSpec(
            num_scalar_prefetch=0,
            grid=grid,
            in_specs=[pl.BlockSpec((block_rows, lanes), lambda i: (i, 0))],
            out_specs=pl.BlockSpec((block_rows, lanes), lambda i: (i, 0)),
        ),
        compiler_params=pltpu.CompilerParams(
            dimension_semantics=("parallel",),      # lets v7x shard across 2 TCs
            vmem_limit_bytes=32 * 1024 * 1024,      # headroom; safe on v5e..v7x
        ),
    )(x2d)

    if padded_n != n:
        return out2d.reshape(-1)[:n].reshape(orig_shape)
    return out2d.reshape(orig_shape)


def _reference(x, kind):
    xf = x.astype(jnp.float32)
    if kind == "relu":
        return jnp.maximum(xf, 0.0).astype(x.dtype)
    return (xf * 0.5 * (1.0 + jax.lax.erf(xf / math.sqrt(2.0)))).astype(x.dtype)


if __name__ == "__main__":
    key = jax.random.PRNGKey(0)
    k0, k1 = jax.random.split(key)

    # NCHW conv-style activation input: batch=2, C=4, H=W=16 (aligned path).
    x_aligned = jax.random.normal(k0, (2, 4, 16, 16), dtype=jnp.float32)
    # Deliberately misaligned size to exercise the small-pad fallback path.
    x_odd = jax.random.normal(k1, (3, 5, 7), dtype=jnp.float32)

    ok = True
    for name, x in (("aligned", x_aligned), ("odd", x_odd)):
        for kind in ("gelu", "relu"):
            y = activate_fun(x, kind)
            y = jax.block_until_ready(y)
            y_ref = _reference(x, kind)
            if y.shape != x.shape or not jnp.allclose(y, y_ref, atol=1e-5, rtol=1e-5):
                ok = False
                print(f"MISMATCH for {kind} ({name})")

    if ok:
        print("KERNEL_OK")
</pallas_src>

<mosaic_0001>
module attributes {stable_mosaic.version = 11 : i64} {
  func.func @_activate_kernel(%arg0: i32, %arg1: memref<8x256xf32, #tpu.memory_space<vmem>>, %arg2: memref<8x256xf32, #tpu.memory_space<vmem>>) attributes {dimension_semantics = [#tpu.dimension_semantics<parallel>], iteration_bounds = array<i64: 1>, scalar_prefetch = 0 : i64, scratch_operands = 0 : i64, tpu.core_type = #tpu.core_type<tc>, window_params = [{transform_indices = @transform_0, window_bounds = array<i64: 8, 256>}, {transform_indices = @transform_1, window_bounds = array<i64: 8, 256>}]} {
    %c0 = arith.constant 0 : index
    %c0_0 = arith.constant 0 : index
    %0 = vector.load %arg1[%c0, %c0_0] : memref<8x256xf32, #tpu.memory_space<vmem>>, vector<8x256xf32>
    %cst = arith.constant 5.000000e-01 : f32
    %1 = vector.broadcast %cst : f32 to vector<8x256xf32>
    %2 = arith.mulf %0, %1 : vector<8x256xf32>
    %cst_1 = arith.constant 0.707106769 : f32
    %3 = vector.broadcast %cst_1 : f32 to vector<8x256xf32>
    %4 = arith.mulf %0, %3 : vector<8x256xf32>
    %5 = math.erf %4 : vector<8x256xf32>
    %cst_2 = arith.constant 1.000000e+00 : f32
    %6 = vector.broadcast %cst_2 : f32 to vector<8x256xf32>
    %7 = arith.addf %6, %5 : vector<8x256xf32>
    %8 = arith.mulf %2, %7 : vector<8x256xf32>
    %c0_3 = arith.constant 0 : index
    %c0_4 = arith.constant 0 : index
    %9 = vector.load %arg2[%c0_3, %c0_4] : memref<8x256xf32, #tpu.memory_space<vmem>>, vector<8x256xf32>
    tpu.vector_store %arg2[%c0_3, %c0_4], %8 {strides = array<i32>} : memref<8x256xf32, #tpu.memory_space<vmem>>, vector<8x256xf32>,
    return
  }
  func.func @transform_0(%arg0: i32) -> (i32, i32) {
    %c0_i32 = arith.constant 0 : i32
    %c0_i32_0 = arith.constant 0 : i32
    return %arg0, %c0_i32 : i32, i32
  }
  func.func @transform_1(%arg0: i32) -> (i32, i32) {
    %c0_i32 = arith.constant 0 : i32
    %c0_i32_0 = arith.constant 0 : i32
    return %arg0, %c0_i32 : i32, i32
  }
}

</mosaic_0001>

<llo_original>
// kernel: tpu_custom_call.1
$region0: #{tpu_custom_call.1}
  #allocation0 [shape = 'u32[]', space=smem, size = 0x4, offset = 0x4, fixed_abs, tag = 'smem constant byte address 0x4 - core index']
  #allocation1 [shape = 'u32[144,128]{1,0:T(1,128)}', space=vmem, size = 0x12000, scoped, tag = 'internal scratch']
  %s0 = inlined_call_operand.hbm [shape: f32[8,256], index: 0, kind: input, shape index: {}]
  %s1 = inlined_call_operand.hbm [shape: f32[8,256], index: 1, kind: output, shape index: {}]
  %s2 = sld [smem:[#allocation0]]
  $region18: #{tpu_custom_call.1} parent=0
    _
  %s4 = ssub.s32 1, %s2
  %s5 = scalar_select 0, %s4, %s2
  $region1: #{tpu_custom_call.1} parent=0
    #allocation2 [shape = 'u8[8192]{0}', space=vmem, size = 0x2000, scoped, tag = 'input window, operand 0, single buffered']
    #allocation3 [shape = 's32[1]{0}', space=sflag, size = 0x4, scoped, tag = 'scoped memory for tpu_custom_call.1']
    #allocation4 [shape = 's32[1]{0}', space=sflag, size = 0x4, scoped, tag = 'scoped memory for tpu_custom_call.1']
    #allocation5 [shape = 'u8[8192]{0}', space=vmem, size = 0x2000, scoped, tag = 'output window, operand 0, single buffered']
    %6 = vsyncpa [#allocation3], 0
    %7 = vsyncpa [#allocation4], 0
    // Predicated region
    $region2: #{tpu_custom_call.1} parent=1 // pred_check
      _
    $region3: #{tpu_custom_call.1} parent=1 // pred_check_branch
      %9 = sbr.rel (0) target = $region5
    $region4: #{tpu_custom_call.1} parent=1 // pred_region
      %s11 = ssub.s32 256, 256
      %12 = vsyncadd [#allocation3], %s11
      %s14 = sshll.u32 [#allocation2], 4
      %s15 = int_to_ptr.vmem [resolvable:$true] %s14
      %17 = dma.hbm_to_vmem [thread:$0]  %s0, 256, %s15, [#allocation3]
    $region5: #{tpu_custom_call.1} parent=1 // pred_fallthru
      _
    // Predicated region
    $region6: #{tpu_custom_call.1} parent=1 // pred_check
      _
    $region7: #{tpu_custom_call.1} parent=1 // pred_check_branch
      %19 = sbr.rel (0) target = $region9
    $region8: #{tpu_custom_call.1} parent=1 // pred_region
      %20 = dma.done [#allocation3], 256
    $region9: #{tpu_custom_call.1} parent=1 // pred_fallthru
      _
    %v21 = vld [vmem:[#allocation2] sm:$0xff]
    %v22 = vld [vmem:[#allocation2 + $0x8] sm:$0xff]
    %v23 = vmul.f32 %v21, 0.5
    %v24 = vmul.f32 %v22, 0.5
    %v25 = vmul.f32 %v21, 0.70710677
    %v26 = vmul.f32 %v22, 0.70710677
    %v27 = verf.f32.pop %v25
    %v28 = verf.f32.pop %v26
    %v29 = vadd.f32 %v27, 1.0
    %v30 = vadd.f32 %v28, 1.0
    %v31 = vmul.f32 %v23, %v29
    %v32 = vmul.f32 %v24, %v30
    %33 = vst [vmem:[#allocation5] sm:$0xff] %v31
    %34 = vst [vmem:[#allocation5 + $0x8] sm:$0xff] %v32
    // Predicated region
    $region10: #{tpu_custom_call.1} parent=1 // pred_check
      _
    $region11: #{tpu_custom_call.1} parent=1 // pred_check_branch
      %36 = sbr.rel (0) target = $region13
    $region12: #{tpu_custom_call.1} parent=1 // pred_region
      %s38 = ssub.s32 256, 256
      %39 = vsyncadd [#allocation4], %s38
      %s41 = sshll.u32 [#allocation5], 4
      %s42 = int_to_ptr.vmem [resolvable:$true] %s41
      %44 = dma.vmem_to_hbm [thread:$0]  %s42, 256, %s1, [#allocation4]
    $region13: #{tpu_custom_call.1} parent=1 // pred_fallthru
      _
    // Predicated region
    $region14: #{tpu_custom_call.1} parent=1 // pred_check
      _
    $region15: #{tpu_custom_call.1} parent=1 // pred_check_branch
      %46 = sbr.rel (0) target = $region17
    $region16: #{tpu_custom_call.1} parent=1 // pred_region
      %47 = dma.done [#allocation4], 256
    $region17: #{tpu_custom_call.1} parent=1 // pred_fallthru
      _
    %48 = vsyncpa [#allocation3], 1
    %49 = vsyncpa [#allocation4], 1

</llo_original>
